<compile_context>
chip_gen: v5e
topology: v5e:2x2
jax: 0.10.0
libtpu: 0.0.40
codegen_flags: <defaults>
</compile_context>

<pallas_src>
import math

import jax
import jax.numpy as jnp
from jax.experimental import pallas as pl
from jax.experimental.pallas import tpu as pltpu


def _round_up(x, m):
    return ((x + m - 1) // m) * m


def _mlp_kernel(x_ref, w1_ref, b1_ref, w2_ref, b2_ref, out_ref):
    # Cast x to the MXU input dtype (e.g. bf16) in VMEM; x's HBM bytes are
    # untouched.  Both matmuls accumulate in f32 on the MXU.
    x = x_ref[...].astype(w1_ref.dtype)
    h = jnp.dot(x, w1_ref[...], preferred_element_type=jnp.float32)
    h = h + b1_ref[...].astype(jnp.float32)
    # LeakyReLU(negative_slope=0.25): single VALU max in f32.
    h = jnp.maximum(h, 0.25 * h)
    o = jnp.dot(h.astype(w2_ref.dtype), w2_ref[...],
                preferred_element_type=jnp.float32)
    o = o + b2_ref[...].astype(jnp.float32)
    out_ref[...] = o.astype(out_ref.dtype)


def prepare_params(params, *, compute_dtype=jnp.bfloat16):
    """One-time parameter prep (call once, NOT per forward step).

    Casts the matmul weights to `compute_dtype` (bf16 default: native MXU rate
    on v5e/v6e/v7x, half the weight HBM/VMEM bytes) and reshapes biases to
    (1, d).  Biases keep their original (f32) dtype since the bias-add
    epilogue runs in f32 anyway.  Pass compute_dtype=None to keep f32 weights.
    """
    w1, b1, w2, b2 = params["w1"], params["b1"], params["w2"], params["b2"]
    if compute_dtype is not None:
        w1 = w1.astype(compute_dtype)
        w2 = w2.astype(compute_dtype)
    return {
        "w1": w1,
        "b1": b1.reshape(1, -1),
        "w2": w2,
        "b2": b2.reshape(1, -1),
    }


def traj_encoder_mlp_forward(x, prepared, *, block_batch=1024,
                             vmem_budget_bytes=24 << 20):
    """Pallas forward of TrajEncoderMLP; returns dict(mean=..., stddev=...).

    `prepared` must come from prepare_params().  block_batch is the target
    batch tile (rounded to a multiple of 16, shrunk to fit the VMEM budget).
    """
    w1, b1, w2, b2 = prepared["w1"], prepared["b1"], prepared["w2"], prepared["b2"]
    out_dtype = x.dtype

    unsqueezed = x.ndim == 1
    if unsqueezed:
        x = x[None, :]
    batch, d_in = x.shape
    d_hid = w1.shape[1]
    d_out = w2.shape[1]

    # --- batch tile: as large as the budget allows (amortizes ~0.35us per
    # grid step); multiple of 16 covers f32/bf16 sublane packing.
    tb = min(_round_up(block_batch, 16), _round_up(batch, 16))

    def _vmem_bytes(t):
        return (2 * t * d_in * x.dtype.itemsize                      # x tiles (double-buffered)
                + 2 * t * d_out * jnp.dtype(out_dtype).itemsize      # out tiles (double-buffered)
                + t * d_hid * 4                                      # f32 hidden activations
                + (d_in * d_hid + d_hid * d_out) * w1.dtype.itemsize # resident weights
                + (d_hid + d_out) * b1.dtype.itemsize)               # resident biases

    while tb > 16 and _vmem_bytes(tb) > vmem_budget_bytes:
        tb = _round_up(tb // 2, 16)
    grid = (pl.cdiv(batch, tb),)

    cost = pl.CostEstimate(
        flops=2 * batch * (d_in * d_hid + d_hid * d_out),
        transcendentals=0,
        bytes_accessed=(x.dtype.itemsize * batch * d_in
                        + w1.dtype.itemsize * (d_in * d_hid + d_hid * d_out)
                        + b1.dtype.itemsize * (d_hid + d_out)
                        + jnp.dtype(out_dtype).itemsize * batch * d_out),
    )

    # Grid-invariant weight/bias blocks: constant index_map keeps them
    # VMEM-resident with no re-DMA; Buffered(1) avoids a pointless second
    # buffer copy (the VMEM saving matters on v7x's 64 MiB/TC).
    def _resident(shape):
        return pl.BlockSpec(shape, lambda i: (0, 0),
                            pipeline_mode=pl.Buffered(1))

    out = pl.pallas_call(
        _mlp_kernel,
        out_shape=jax.ShapeDtypeStruct((batch, d_out), out_dtype),
        grid_spec=pl.GridSpec(
            grid=grid,
            in_specs=[
                pl.BlockSpec((tb, d_in), lambda i: (i, 0)),   # x: pipelined per step
                _resident((d_in, d_hid)),                     # W1
                _resident((1, d_hid)),                        # b1
                _resident((d_hid, d_out)),                    # W2
                _resident((1, d_out)),                        # b2
            ],
            out_specs=pl.BlockSpec((tb, d_out), lambda i: (i, 0)),
        ),
        compiler_params=pltpu.CompilerParams(
            dimension_semantics=("parallel",),
            vmem_limit_bytes=32 << 20,
        ),
        cost_estimate=cost,
    )(x, w1, b1, w2, b2)

    if unsqueezed:
        out = out[0]

    # Dummy.stddev is a constant; return a broadcast instead of writing a full
    # ones_like array to HBM (under jit this fuses into the consumer).
    stddev = jnp.broadcast_to(jnp.ones((), out.dtype), out.shape)
    return {"mean": out, "stddev": stddev}


def init_params(key, traj_encoder_obs_dim, output_dim, dtype=jnp.float32):
    """Deterministic init matching PyTorch nn.Linear default
    (U(-1/sqrt(fan_in), 1/sqrt(fan_in)) for both weights and biases).
    Weights stored as (in, out) = transpose of PyTorch's (out, in)."""
    k1, k2, k3, k4 = jax.random.split(key, 4)
    bound1 = 1.0 / math.sqrt(traj_encoder_obs_dim)
    bound2 = 1.0 / math.sqrt(output_dim)
    w1 = jax.random.uniform(k1, (traj_encoder_obs_dim, output_dim),
                            dtype=dtype, minval=-bound1, maxval=bound1)
    b1 = jax.random.uniform(k2, (output_dim,), dtype=dtype,
                            minval=-bound1, maxval=bound1)
    w2 = jax.random.uniform(k3, (output_dim, output_dim),
                            dtype=dtype, minval=-bound2, maxval=bound2)
    b2 = jax.random.uniform(k4, (output_dim,), dtype=dtype,
                            minval=-bound2, maxval=bound2)
    return {"w1": w1, "b1": b1, "w2": w2, "b2": b2}


def _reference_forward(x, params):
    h = x @ params["w1"] + params["b1"]
    h = jnp.where(h >= 0, h, 0.25 * h)
    return h @ params["w2"] + params["b2"]


if __name__ == "__main__":
    traj_encoder_obs_dim = 16
    output_dim = 32
    batch = 8

    key = jax.random.PRNGKey(0)
    kp, kx, kx2 = jax.random.split(key, 3)
    params = init_params(kp, traj_encoder_obs_dim, output_dim)

    # One-time parameter prep (f32 for exact checks, bf16 default elsewhere).
    prepared_f32 = prepare_params(params, compute_dtype=None)
    prepared_bf16 = prepare_params(params)  # default bf16 MXU weights

    # 2-D (batched) input, exact f32 path.
    x = jax.random.normal(kx, (batch, traj_encoder_obs_dim), dtype=jnp.float32)
    out = traj_encoder_mlp_forward(x, prepared_f32)
    jax.block_until_ready(out["mean"])
    jax.block_until_ready(out["stddev"])

    ref = _reference_forward(x, params)
    assert out["mean"].shape == (batch, output_dim)
    assert out["stddev"].shape == (batch, output_dim)
    assert jnp.allclose(out["mean"], ref, atol=1e-5, rtol=1e-5)
    assert jnp.all(out["stddev"] == 1.0)

    # 1-D (unsqueezed) input path.
    x1 = x[0]
    out1 = traj_encoder_mlp_forward(x1, prepared_f32)
    jax.block_until_ready(out1["mean"])
    assert out1["mean"].shape == (output_dim,)
    assert out1["stddev"].shape == (output_dim,)
    assert jnp.allclose(out1["mean"], ref[0], atol=1e-5, rtol=1e-5)

    # Multi-tile grid + ragged batch (exercises the masked partial tail block,
    # no wrapper-side padding or slicing).
    x_big = jax.random.normal(kx2, (37, traj_encoder_obs_dim), dtype=jnp.float32)
    out_big = traj_encoder_mlp_forward(x_big, prepared_f32, block_batch=16)
    jax.block_until_ready(out_big["mean"])
    ref_big = _reference_forward(x_big, params)
    assert out_big["mean"].shape == (37, output_dim)
    assert jnp.allclose(out_big["mean"], ref_big, atol=1e-5, rtol=1e-5)

    # Default bf16-weight path (native MXU rate, f32 accumulation).
    out_bf16 = traj_encoder_mlp_forward(x, prepared_bf16)
    jax.block_until_ready(out_bf16["mean"])
    assert jnp.allclose(out_bf16["mean"], ref, atol=5e-2, rtol=5e-2)

    print("KERNEL_OK")
</pallas_src>

<mosaic_0001>
module attributes {stable_mosaic.version = 11 : i64} {
  func.func @_mlp_kernel(%arg0: i32, %arg1: memref<16x16xf32, #tpu.memory_space<vmem>>, %arg2: memref<16x32xf32, #tpu.memory_space<vmem>>, %arg3: memref<1x32xf32, #tpu.memory_space<vmem>>, %arg4: memref<32x32xf32, #tpu.memory_space<vmem>>, %arg5: memref<1x32xf32, #tpu.memory_space<vmem>>, %arg6: memref<16x32xf32, #tpu.memory_space<vmem>>) attributes {dimension_semantics = [#tpu.dimension_semantics<parallel>], iteration_bounds = array<i64: 1>, scalar_prefetch = 0 : i64, scratch_operands = 0 : i64, tpu.core_type = #tpu.core_type<tc>, window_params = [{transform_indices = @transform_0, window_bounds = array<i64: 16, 16>}, {pipeline_mode = #tpu.pipeline_mode<synchronous>, transform_indices = @transform_1, window_bounds = array<i64: 16, 32>}, {pipeline_mode = #tpu.pipeline_mode<synchronous>, transform_indices = @transform_2, window_bounds = array<i64: 1, 32>}, {pipeline_mode = #tpu.pipeline_mode<synchronous>, transform_indices = @transform_3, window_bounds = array<i64: 32, 32>}, {pipeline_mode = #tpu.pipeline_mode<synchronous>, transform_indices = @transform_4, window_bounds = array<i64: 1, 32>}, {transform_indices = @transform_5, window_bounds = array<i64: 16, 32>}]} {
    %c0 = arith.constant 0 : index
    %c0_0 = arith.constant 0 : index
    %0 = vector.load %arg1[%c0, %c0_0] : memref<16x16xf32, #tpu.memory_space<vmem>>, vector<16x16xf32>
    %c0_1 = arith.constant 0 : index
    %c0_2 = arith.constant 0 : index
    %1 = vector.load %arg2[%c0_1, %c0_2] : memref<16x32xf32, #tpu.memory_space<vmem>>, vector<16x32xf32>
    %cst = arith.constant dense<0.000000e+00> : vector<16x32xf32>
    %2 = tpu.matmul %0, %1, %cst {dimension_numbers = #tpu.dot_dimension_numbers<[1], [0], [0], [1], [0, 0, 1, 1], [], []>} : vector<16x16xf32>, vector<16x32xf32>, vector<16x32xf32> -> vector<16x32xf32>
    %c0_3 = arith.constant 0 : index
    %c0_4 = arith.constant 0 : index
    %3 = vector.load %arg3[%c0_3, %c0_4] : memref<1x32xf32, #tpu.memory_space<vmem>>, vector<1x32xf32>
    %4 = vector.broadcast %3 : vector<1x32xf32> to vector<16x32xf32>
    %5 = arith.addf %2, %4 : vector<16x32xf32>
    %cst_5 = arith.constant 2.500000e-01 : f32
    %6 = vector.broadcast %cst_5 : f32 to vector<16x32xf32>
    %7 = arith.mulf %6, %5 : vector<16x32xf32>
    %8 = arith.maximumf %5, %7 : vector<16x32xf32>
    %c0_6 = arith.constant 0 : index
    %c0_7 = arith.constant 0 : index
    %9 = vector.load %arg4[%c0_6, %c0_7] : memref<32x32xf32, #tpu.memory_space<vmem>>, vector<32x32xf32>
    %cst_8 = arith.constant dense<0.000000e+00> : vector<16x32xf32>
    %10 = tpu.matmul %8, %9, %cst_8 {dimension_numbers = #tpu.dot_dimension_numbers<[1], [0], [0], [1], [0, 0, 1, 1], [], []>} : vector<16x32xf32>, vector<32x32xf32>, vector<16x32xf32> -> vector<16x32xf32>
    %c0_9 = arith.constant 0 : index
    %c0_10 = arith.constant 0 : index
    %11 = vector.load %arg5[%c0_9, %c0_10] : memref<1x32xf32, #tpu.memory_space<vmem>>, vector<1x32xf32>
    %12 = vector.broadcast %11 : vector<1x32xf32> to vector<16x32xf32>
    %13 = arith.addf %10, %12 : vector<16x32xf32>
    %c0_11 = arith.constant 0 : index
    %c0_12 = arith.constant 0 : index
    %14 = vector.load %arg6[%c0_11, %c0_12] : memref<16x32xf32, #tpu.memory_space<vmem>>, vector<16x32xf32>
    tpu.vector_store %arg6[%c0_11, %c0_12], %13 {strides = array<i32>} : memref<16x32xf32, #tpu.memory_space<vmem>>, vector<16x32xf32>,
    return
  }
  func.func @transform_0(%arg0: i32) -> (i32, i32) {
    %c0_i32 = arith.constant 0 : i32
    %c0_i32_0 = arith.constant 0 : i32
    return %arg0, %c0_i32 : i32, i32
  }
  func.func @transform_1(%arg0: i32) -> (i32, i32) {
    %c0_i32 = arith.constant 0 : i32
    %c0_i32_0 = arith.constant 0 : i32
    %c0_i32_1 = arith.constant 0 : i32
    return %c0_i32, %c0_i32_0 : i32, i32
  }
  func.func @transform_2(%arg0: i32) -> (i32, i32) {
    %c0_i32 = arith.constant 0 : i32
    %c0_i32_0 = arith.constant 0 : i32
    %c0_i32_1 = arith.constant 0 : i32
    return %c0_i32, %c0_i32_0 : i32, i32
  }
  func.func @transform_3(%arg0: i32) -> (i32, i32) {
    %c0_i32 = arith.constant 0 : i32
    %c0_i32_0 = arith.constant 0 : i32
    %c0_i32_1 = arith.constant 0 : i32
    return %c0_i32, %c0_i32_0 : i32, i32
  }
  func.func @transform_4(%arg0: i32) -> (i32, i32) {
    %c0_i32 = arith.constant 0 : i32
    %c0_i32_0 = arith.constant 0 : i32
    %c0_i32_1 = arith.constant 0 : i32
    return %c0_i32, %c0_i32_0 : i32, i32
  }
  func.func @transform_5(%arg0: i32) -> (i32, i32) {
    %c0_i32 = arith.constant 0 : i32
    %c0_i32_0 = arith.constant 0 : i32
    return %arg0, %c0_i32 : i32, i32
  }
}

</mosaic_0001>

<llo_original>
// kernel: tpu_custom_call.1
$region0: #{tpu_custom_call.1}
  #allocation0 [shape = 'u32[]', space=smem, size = 0x4, offset = 0x4, fixed_abs, tag = 'smem constant byte address 0x4 - core index']
  #allocation1 [shape = 'u32[72,128]{1,0:T(1,128)}', space=vmem, size = 0x9000, scoped, tag = 'internal scratch']
  %s0 = inlined_call_operand.hbm [shape: f32[8,16], index: 0, kind: input, shape index: {}]
  %s1 = inlined_call_operand.hbm [shape: f32[16,32], index: 1, kind: input, shape index: {}]
  %s2 = inlined_call_operand.vmem [shape: f32[1,32], index: 2, kind: input, shape index: {}]
  %s3 = inlined_call_operand.hbm [shape: f32[32,32], index: 3, kind: input, shape index: {}]
  %s4 = inlined_call_operand.vmem [shape: f32[1,32], index: 4, kind: input, shape index: {}]
  %s5 = inlined_call_operand.hbm [shape: f32[8,32], index: 5, kind: output, shape index: {}]
  %s6 = sld [smem:[#allocation0]]
  $region42: #{tpu_custom_call.1} parent=0
    _
  %s8 = ssub.s32 1, %s6
  %s9 = scalar_select 0, %s8, %s6
  $region1: #{tpu_custom_call.1} parent=0
    #allocation2 [shape = 'u8[8192]{0}', space=vmem, size = 0x2000, scoped, tag = 'input window, operand 0, single buffered']
    #allocation3 [shape = 's32[1]{0}', space=sflag, size = 0x4, scoped, tag = 'scoped memory for tpu_custom_call.1']
    #allocation4 [shape = 's32[1]{0}', space=sflag, size = 0x4, scoped, tag = 'scoped memory for tpu_custom_call.1']
    #allocation5 [shape = 'u8[8192]{0}', space=vmem, size = 0x2000, scoped, tag = 'input window, operand 1, single buffered']
    #allocation6 [shape = 's32[1]{0}', space=sflag, size = 0x4, scoped, tag = 'scoped memory for tpu_custom_call.1']
    #allocation7 [shape = 'u8[16384]{0}', space=vmem, size = 0x4000, scoped, tag = 'input window, operand 3, single buffered']
    #allocation8 [shape = 'u8[8192]{0}', space=vmem, size = 0x2000, scoped, tag = 'output window, operand 0, single buffered']
    %10 = vsyncpa [#allocation3], 0
    %11 = vsyncpa [#allocation6], 0
    %12 = vsyncpa [#allocation4], 0
    // Predicated region
    $region2: #{tpu_custom_call.1} parent=1 // pred_check
      _
    $region3: #{tpu_custom_call.1} parent=1 // pred_check_branch
      %14 = sbr.rel (0) target = $region5
    $region4: #{tpu_custom_call.1} parent=1 // pred_region
      %16 = vsyncadd [#allocation3], 128
      %s17 = sshll.u32 %s0, 4
      %s18 = int_to_ptr.hbm [resolvable:$true] %s17
      %s19 = sshll.u32 [#allocation2], 4
      %s20 = int_to_ptr.vmem [resolvable:$true] %s19
      %25 = dma.hbm_to_vmem [thread:$0]  %s18, 128, %s20, [#allocation3], 128, 128, 8
    $region5: #{tpu_custom_call.1} parent=1 // pred_fallthru
      _
    // Predicated region
    $region6: #{tpu_custom_call.1} parent=1 // pred_check
      _
    $region7: #{tpu_custom_call.1} parent=1 // pred_check_branch
      %27 = sbr.rel (0) target = $region9
    $region8: #{tpu_custom_call.1} parent=1 // pred_region
      %29 = vsyncadd [#allocation6], 0
      %s30 = sshll.u32 %s1, 4
      %s31 = int_to_ptr.hbm [resolvable:$true] %s30
      %s32 = sshll.u32 [#allocation5], 4
      %s33 = int_to_ptr.vmem [resolvable:$true] %s32
      %38 = dma.hbm_to_vmem [thread:$0]  %s31, 256, %s33, [#allocation6], 128, 128, 8
    $region9: #{tpu_custom_call.1} parent=1 // pred_fallthru
      _
    // Predicated region
    $region10: #{tpu_custom_call.1} parent=1 // pred_check
      _
    $region11: #{tpu_custom_call.1} parent=1 // pred_check_branch
      %40 = sbr.rel (0) target = $region13
    $region12: #{tpu_custom_call.1} parent=1 // pred_region
      _
    $region13: #{tpu_custom_call.1} parent=1 // pred_fallthru
      _
    // Predicated region
    $region14: #{tpu_custom_call.1} parent=1 // pred_check
      _
    $region15: #{tpu_custom_call.1} parent=1 // pred_check_branch
      %42 = sbr.rel (0) target = $region17
    $region16: #{tpu_custom_call.1} parent=1 // pred_region
      %44 = vsyncadd [#allocation6], 0
      %s45 = sshll.u32 %s3, 4
      %s46 = int_to_ptr.hbm [resolvable:$true] %s45
      %s47 = sshll.u32 [#allocation7], 4
      %s48 = int_to_ptr.vmem [resolvable:$true] %s47
      %53 = dma.hbm_to_vmem [thread:$0]  %s46, 512, %s48, [#allocation6], 128, 128, 8
    $region17: #{tpu_custom_call.1} parent=1 // pred_fallthru
      _
    // Predicated region
    $region18: #{tpu_custom_call.1} parent=1 // pred_check
      _
    $region19: #{tpu_custom_call.1} parent=1 // pred_check_branch
      %55 = sbr.rel (0) target = $region21
    $region20: #{tpu_custom_call.1} parent=1 // pred_region
      _
    $region21: #{tpu_custom_call.1} parent=1 // pred_fallthru
      _
    // Predicated region
    $region22: #{tpu_custom_call.1} parent=1 // pred_check
      _
    $region23: #{tpu_custom_call.1} parent=1 // pred_check_branch
      %57 = sbr.rel (0) target = $region25
    $region24: #{tpu_custom_call.1} parent=1 // pred_region
      %59 = dma.done [#allocation3], 256
    $region25: #{tpu_custom_call.1} parent=1 // pred_fallthru
      _
    // Predicated region
    $region26: #{tpu_custom_call.1} parent=1 // pred_check
      _
    $region27: #{tpu_custom_call.1} parent=1 // pred_check_branch
      %61 = sbr.rel (0) target = $region29
    $region28: #{tpu_custom_call.1} parent=1 // pred_region
      %63 = dma.done [#allocation6], 256
    $region29: #{tpu_custom_call.1} parent=1 // pred_fallthru
      _
    // Predicated region
    $region30: #{tpu_custom_call.1} parent=1 // pred_check
      _
    $region31: #{tpu_custom_call.1} parent=1 // pred_check_branch
      %65 = sbr.rel (0) target = $region33
    $region32: #{tpu_custom_call.1} parent=1 // pred_region
      %67 = dma.done [#allocation6], 512
    $region33: #{tpu_custom_call.1} parent=1 // pred_fallthru
      _
    %v68 = vld [vmem:[#allocation2] sm:$0xff]
    %v69 = vld [vmem:[#allocation2 + $0x8] sm:$0xff]
    %v70 = vld [vmem:[#allocation5] sm:$0xff]
    %v71 = vld [vmem:[#allocation5 + $0x8] sm:$0xff]
    %v72 = vld [vmem:[%s2] sm:$0x1]
    %v74 = vperm.slane %v72, 0
    %vm76 = vcmask 130048
    %v78 = vsel %vm76, %v68, 0
    %v81 = vsel %vm76, %v69, 0
    %83 = vmatpush.msra.mxu0 0.0
    %84 = vmatpush.msra.mxu0 0.0
    %85 = vmatpush.msra.mxu0 0.0
    %86 = vmatpush.msra.mxu0 0.0
    %87 = vmatpush.msra.mxu0 0.0
    %88 = vmatpush.msra.mxu0 0.0
    %89 = vmatpush.msra.mxu0 0.0
    %90 = vmatpush.msra.mxu0 0.0
    %91 = vmatpush.msra.mxu0 0.0
    %92 = vmatpush.msra.mxu0 0.0
    %93 = vmatpush.msra.mxu0 0.0
    %94 = vmatpush.msra.mxu0 0.0
    %95 = vmatpush.msra.mxu0 0.0
    %96 = vmatpush.msra.mxu0 0.0
    %97 = vmatpush.msra.mxu0 %v71
    %98 = vmatpush.msra.mxu0 %v70
    %99 = vmatmul.f32.gmra.mxu0 %v78
    %v100 = vpop.f32.mrf.mxu0
    %v101 = vadd.f32 %v74, %v100
    %102 = vmatmul.f32.gmra.mxu0 %v81
    %v103 = vpop.f32.mrf.mxu0
    %v104 = vadd.f32 %v74, %v103
    %105 = vdwg.mxu0
    %v106 = vmul.f32 %v101, 0.25
    %v107 = vmul.f32 %v104, 0.25
    %v108 = vmax.f32 %v101, %v106
    %v109 = vmax.f32 %v104, %v107
    %v110 = vld [vmem:[#allocation7] sm:$0xff]
    %v111 = vld [vmem:[#allocation7 + $0x8] sm:$0xff]
    %v112 = vld [vmem:[#allocation7 + $0x10] sm:$0xff]
    %v113 = vld [vmem:[#allocation7 + $0x18] sm:$0xff]
    %v114 = vld [vmem:[%s4] sm:$0x1]
    %v116 = vperm.slane %v114, 0
    %vm118 = vcmask 261120
    %v120 = vsel %vm118, %v108, 0
    %v123 = vsel %vm118, %v109, 0
    %125 = vmatpush.msra.mxu0 0.0
    %126 = vmatpush.msra.mxu0 0.0
    %127 = vmatpush.msra.mxu0 0.0
    %128 = vmatpush.msra.mxu0 0.0
    %129 = vmatpush.msra.mxu0 0.0
    %130 = vmatpush.msra.mxu0 0.0
    %131 = vmatpush.msra.mxu0 0.0
    %132 = vmatpush.msra.mxu0 0.0
    %133 = vmatpush.msra.mxu0 0.0
    %134 = vmatpush.msra.mxu0 0.0
    %135 = vmatpush.msra.mxu0 0.0
    %136 = vmatpush.msra.mxu0 0.0
    %137 = vmatpush.msra.mxu0 %v113
    %138 = vmatpush.msra.mxu0 %v112
    %139 = vmatpush.msra.mxu0 %v111
    %140 = vmatpush.msra.mxu0 %v110
    %141 = vmatmul.f32.gmra.mxu0 %v120
    %v142 = vpop.f32.mrf.mxu0
    %v143 = vadd.f32 %v116, %v142
    %144 = vmatmul.f32.gmra.mxu0 %v123
    %v145 = vpop.f32.mrf.mxu0
    %v146 = vadd.f32 %v116, %v145
    %147 = vdwg.mxu0
    %148 = vst.msk [vmem:[#allocation8] sm:$0xff] %vm118, %v143
    %149 = vst.msk [vmem:[#allocation8 + $0x8] sm:$0xff] %vm118, %v146
    // Predicated region
    $region34: #{tpu_custom_call.1} parent=1 // pred_check
      _
    $region35: #{tpu_custom_call.1} parent=1 // pred_check_branch
      %151 = sbr.rel (0) target = $region37
    $region36: #{tpu_custom_call.1} parent=1 // pred_region
      %153 = vsyncadd [#allocation4], 128
      %s154 = sshll.u32 [#allocation8], 4
      %s155 = int_to_ptr.vmem [resolvable:$true] %s154
      %s156 = sshll.u32 %s5, 4
      %s157 = int_to_ptr.hbm [resolvable:$true] %s156
      %162 = dma.vmem_to_hbm [thread:$0]  %s155, 128, %s157, [#allocation4], 128, 128, 8
    $region37: #{tpu_custom_call.1} parent=1 // pred_fallthru
      _
    // Predicated region
    $region38: #{tpu_custom_call.1} parent=1 // pred_check
      _
    $region39: #{tpu_custom_call.1} parent=1 // pred_check_branch
      %164 = sbr.rel (0) target = $region41
    $region40: #{tpu_custom_call.1} parent=1 // pred_region
      %166 = dma.done [#allocation4], 256
    $region41: #{tpu_custom_call.1} parent=1 // pred_fallthru
      _
    %167 = vsyncpa [#allocation3], 1
    %168 = vsyncpa [#allocation6], 1
    %169 = vsyncpa [#allocation4], 1

</llo_original>
